<compile_context>
chip_gen: v7x
topology: tpu7x:2x2x1
jax: 0.10.0
libtpu: 0.0.40
codegen_flags: <defaults>
</compile_context>

<pallas_src>
import functools

import jax
import jax.numpy as jnp
from jax import lax
from jax.experimental import pallas as pl
from jax.experimental.pallas import tpu as pltpu

NUM_RESOURCES = 5
_LANE = 128
_SUBLANE = 8
_TB = 512  # batch tile when B is large (512x128 f32 blocks ~ 256 KiB each)


def _round_up(x, m):
    return (x + m - 1) // m * m


def _layout(num_inputs):
    """Row offsets of each section inside the packed [rows, 128] parameter slab."""
    nip = _round_up(num_inputs, _SUBLANE)
    o_w1 = 0                      # [nip, 128]   linear1 weight (zero-padded)
    o_w2 = o_w1 + nip             # [128, 128]   linear2 weight (zero-padded)
    o_wh = o_w2 + _LANE           # [128, 128]   5 head weights, lane-concatenated
    o_b = o_wh + _LANE            # [8,   128]   row0=b1, row1=b2, row2=head biases
    o_seg = o_b + _SUBLANE        # [128, 128]   block-diagonal softmax segment mask
    rows = o_seg + _LANE
    return nip, o_w1, o_w2, o_wh, o_b, o_seg, rows


def _policy_kernel(a_per_head, n_heads, nip, o_w1, o_w2, o_wh, o_b, o_seg,
                   x_ref, p_ref, out_ref):
    """Fused MLP + 5-head softmax.

    x_ref  : [tb, nip]    f32  (batch tile, feature dim zero-padded to sublanes)
    p_ref  : [rows, 128]  f32  (packed parameter slab, see _layout)
    out_ref: [tb, 128]    f32  (per-head softmax probs in lanes [0, 5*A))
    """
    HP = _LANE
    NP = _LANE

    # Static, sublane-aligned slab slices (layout plumbing only, no compute).
    w1 = p_ref[o_w1:o_w1 + nip, :]          # [nip, 128]
    w2 = p_ref[o_w2:o_w2 + HP, :]           # [128, 128]
    wh = p_ref[o_wh:o_wh + HP, :]           # [128, 128]
    bias = p_ref[o_b:o_b + _SUBLANE, :]     # [8,   128]
    seg = p_ref[o_seg:o_seg + NP, :]        # [128, 128]  precomputed on host

    b1 = bias[0:1, :]
    b2 = bias[1:2, :]
    bh = bias[2:3, :]

    x = x_ref[...]
    h1 = jnp.maximum(jnp.dot(x, w1, preferred_element_type=jnp.float32) + b1, 0.0)
    h2 = jnp.maximum(jnp.dot(h1, w2, preferred_element_type=jnp.float32) + b2, 0.0)
    logits = jnp.dot(h2, wh, preferred_element_type=jnp.float32) + bh    # [tb, 128]

    # Per-head (segment) max: 5 static iterations over a single vreg each.
    # Padded lanes (>= 5*A) keep m = 0 and have logits = 0 -> exp = 1, denom = 1.
    lane = lax.broadcasted_iota(jnp.int32, (1, NP), 1)
    m = jnp.zeros_like(logits)
    for h in range(n_heads):
        lo = h * a_per_head
        hi = lo + a_per_head
        in_h = (lane >= lo) & (lane < hi)
        head_max = jnp.max(jnp.where(in_h, logits, -jnp.inf), axis=-1, keepdims=True)
        m = jnp.where(in_h, head_max, m)

    e = jnp.exp(logits - m)
    # Per-head denominators via the block-diagonal segment matmul (MXU is idle).
    denom = jnp.dot(e, seg, preferred_element_type=jnp.float32)
    out_ref[...] = e * pl.reciprocal(denom, approx=False)


@functools.partial(jax.jit, static_argnums=(2,))
def _policy_forward_jit(state, params, a_per_head):
    B, NI = state.shape
    nip, o_w1, o_w2, o_wh, o_b, o_seg, rows = _layout(NI)
    assert params.shape == (rows, _LANE)
    NP = _LANE

    # Batch tiling: single block for small B, (512 x 128) tiles for large B.
    if B <= _TB:
        Bp = max(_SUBLANE, _round_up(B, _SUBLANE))
        tb = Bp
    else:
        Bp = _round_up(B, _TB)
        tb = _TB

    x = state
    if (Bp, nip) != (B, NI):
        x = jnp.pad(state, ((0, Bp - B), (0, nip - NI)))

    kernel = functools.partial(_policy_kernel, a_per_head, NUM_RESOURCES, nip,
                               o_w1, o_w2, o_wh, o_b, o_seg)
    probs = pl.pallas_call(
        kernel,
        out_shape=jax.ShapeDtypeStruct((Bp, NP), jnp.float32),
        grid=(Bp // tb,),
        in_specs=[
            pl.BlockSpec((tb, nip), lambda i: (i, 0)),      # batch tile of x
            pl.BlockSpec((rows, _LANE), lambda i: (0, 0)),  # resident params slab
        ],
        out_specs=pl.BlockSpec((tb, NP), lambda i: (i, 0)),
        compiler_params=pltpu.CompilerParams(
            dimension_semantics=("parallel",)),
    )(x, params)

    # Split the lane-dense slab back into the 5 heads (layout plumbing only).
    A = a_per_head
    return tuple(probs[:B, i * A:(i + 1) * A] for i in range(NUM_RESOURCES))


def policy_forward(state, params, num_actions):
    """state: [B, num_inputs] f32. Returns tuple of 5 arrays [B, A] (softmaxed)."""
    a_per_head = num_actions // NUM_RESOURCES
    return _policy_forward_jit(state, params, a_per_head)


def init_params(key, num_inputs, num_actions, hidden_size):
    """Deterministic init mimicking torch nn.Linear (U[-1/sqrt(fan_in), +1/sqrt(fan_in)]).

    Everything is packed into one lane-dense f32 slab [rows, 128]:
      rows [o_w1 , o_w1+nip) : linear1 weight  (lanes [0,H), rest zero)
      rows [o_w2 , o_w2+128) : linear2 weight  (rows/lanes [0,H), rest zero)
      rows [o_wh , o_wh+128) : 5 head weights concatenated (lanes [0,5A), rest zero)
      rows [o_b  , o_b + 8 ) : row0=b1, row1=b2, row2=head biases (rest zero)
      rows [o_seg, o_seg+128): block-diagonal softmax segment mask (f32 0/1)
    """
    A = num_actions // NUM_RESOURCES
    NH = NUM_RESOURCES * A
    assert hidden_size <= _LANE and NH <= _LANE
    nip, o_w1, o_w2, o_wh, o_b, o_seg, rows = _layout(num_inputs)

    keys = jax.random.split(key, 14)

    def lin(kw, kb, fan_in, fan_out):
        bound = float(fan_in) ** -0.5
        w = jax.random.uniform(kw, (fan_in, fan_out), jnp.float32, -bound, bound)
        b = jax.random.uniform(kb, (fan_out,), jnp.float32, -bound, bound)
        return w, b

    w1, b1 = lin(keys[0], keys[1], num_inputs, hidden_size)
    w2, b2 = lin(keys[2], keys[3], hidden_size, hidden_size)

    head_ws, head_bs = [], []
    for i in range(NUM_RESOURCES):
        w, b = lin(keys[4 + 2 * i], keys[5 + 2 * i], hidden_size, A)
        head_ws.append(w)
        head_bs.append(b)
    wh = jnp.concatenate(head_ws, axis=1)   # [H, 5*A]
    bh = jnp.concatenate(head_bs, axis=0)   # [5*A]

    # Block-diagonal head mask + identity for padded lanes (they softmax to 1.0).
    lane = jnp.arange(_LANE)
    seg = (lane[:, None] == lane[None, :]).astype(jnp.float32)
    for h in range(NUM_RESOURCES):
        lo, hi = h * A, (h + 1) * A
        in_i = (lane[:, None] >= lo) & (lane[:, None] < hi)
        in_j = (lane[None, :] >= lo) & (lane[None, :] < hi)
        seg = jnp.maximum(seg, (in_i & in_j).astype(jnp.float32))

    slab = jnp.zeros((rows, _LANE), jnp.float32)
    slab = slab.at[o_w1:o_w1 + num_inputs, :hidden_size].set(w1)
    slab = slab.at[o_w2:o_w2 + hidden_size, :hidden_size].set(w2)
    slab = slab.at[o_wh:o_wh + hidden_size, :NH].set(wh)
    slab = slab.at[o_b + 0, :hidden_size].set(b1)
    slab = slab.at[o_b + 1, :hidden_size].set(b2)
    slab = slab.at[o_b + 2, :NH].set(bh)
    slab = slab.at[o_seg:o_seg + _LANE, :].set(seg)
    return slab


def policy_forward_ref(state, params, num_inputs, num_actions, hidden_size):
    """Pure-JAX reference of the PyTorch forward (unpacks the packed slab)."""
    A = num_actions // NUM_RESOURCES
    NH = NUM_RESOURCES * A
    _, o_w1, o_w2, o_wh, o_b, _, _ = _layout(num_inputs)
    w1 = params[o_w1:o_w1 + num_inputs, :hidden_size]
    w2 = params[o_w2:o_w2 + hidden_size, :hidden_size]
    wh = params[o_wh:o_wh + hidden_size, :NH]
    b1 = params[o_b + 0, :hidden_size]
    b2 = params[o_b + 1, :hidden_size]
    bh = params[o_b + 2, :NH]
    h1 = jax.nn.relu(state @ w1 + b1)
    h2 = jax.nn.relu(h1 @ w2 + b2)
    logits = h2 @ wh + bh
    return tuple(
        jax.nn.softmax(logits[:, i * A:(i + 1) * A], axis=1)
        for i in range(NUM_RESOURCES)
    )


if __name__ == "__main__":
    # Small shapes consistent with the module:
    #   num_inputs=8, hidden_size=32, num_actions=15 -> 3 actions per resource head.
    B, NUM_INPUTS, HIDDEN, NUM_ACTIONS = 2, 8, 32, 15

    key = jax.random.PRNGKey(0)
    k_params, k_state = jax.random.split(key)
    params = init_params(k_params, NUM_INPUTS, NUM_ACTIONS, HIDDEN)
    state = jax.random.normal(k_state, (B, NUM_INPUTS), jnp.float32)

    outs = policy_forward(state, params, NUM_ACTIONS)
    outs = jax.block_until_ready(outs)

    # sanity check against pure-JAX reference
    refs = policy_forward_ref(state, params, NUM_INPUTS, NUM_ACTIONS, HIDDEN)
    A = NUM_ACTIONS // NUM_RESOURCES
    for o, r in zip(outs, refs):
        assert o.shape == (B, A)
        assert bool(jnp.all(jnp.isfinite(o)))
        assert float(jnp.max(jnp.abs(o - r))) < 1e-5
        # each row of each head sums to 1 (softmax over dim=1)
        assert float(jnp.max(jnp.abs(jnp.sum(o, axis=1) - 1.0))) < 1e-5

    print("KERNEL_OK")
</pallas_src>

<mosaic_0001>
module attributes {stable_mosaic.version = 11 : i64} {
  func.func @_policy_kernel(%arg0: i32, %arg1: memref<8x8xf32, #tpu.memory_space<vmem>>, %arg2: memref<400x128xf32, #tpu.memory_space<vmem>>, %arg3: memref<8x128xf32, #tpu.memory_space<vmem>>) attributes {dimension_semantics = [#tpu.dimension_semantics<parallel>], iteration_bounds = array<i64: 1>, scalar_prefetch = 0 : i64, scratch_operands = 0 : i64, tpu.core_type = #tpu.core_type<tc>, window_params = [{transform_indices = @transform_0, window_bounds = array<i64: 8, 8>}, {pipeline_mode = #tpu.pipeline_mode<synchronous>, transform_indices = @transform_1, window_bounds = array<i64: 400, 128>}, {transform_indices = @transform_2, window_bounds = array<i64: 8, 128>}]} {
    %c0 = arith.constant 0 : index
    %c0_0 = arith.constant 0 : index
    %0 = vector.load %arg2[%c0, %c0_0] : memref<400x128xf32, #tpu.memory_space<vmem>>, vector<8x128xf32>
    %c8 = arith.constant 8 : index
    %c0_1 = arith.constant 0 : index
    %1 = vector.load %arg2[%c8, %c0_1] : memref<400x128xf32, #tpu.memory_space<vmem>>, vector<128x128xf32>
    %c136 = arith.constant 136 : index
    %c0_2 = arith.constant 0 : index
    %2 = vector.load %arg2[%c136, %c0_2] : memref<400x128xf32, #tpu.memory_space<vmem>>, vector<128x128xf32>
    %c264 = arith.constant 264 : index
    %c0_3 = arith.constant 0 : index
    %3 = vector.load %arg2[%c264, %c0_3] : memref<400x128xf32, #tpu.memory_space<vmem>>, vector<8x128xf32>
    %c272 = arith.constant 272 : index
    %c0_4 = arith.constant 0 : index
    %4 = vector.load %arg2[%c272, %c0_4] : memref<400x128xf32, #tpu.memory_space<vmem>>, vector<128x128xf32>
    %5 = vector.extract_strided_slice %3 {offsets = [0, 0], sizes = [1, 128], strides = [1, 1]} : vector<8x128xf32> to vector<1x128xf32>
    %6 = vector.extract_strided_slice %3 {offsets = [1, 0], sizes = [1, 128], strides = [1, 1]} : vector<8x128xf32> to vector<1x128xf32>
    %7 = vector.extract_strided_slice %3 {offsets = [2, 0], sizes = [1, 128], strides = [1, 1]} : vector<8x128xf32> to vector<1x128xf32>
    %c0_5 = arith.constant 0 : index
    %c0_6 = arith.constant 0 : index
    %8 = vector.load %arg1[%c0_5, %c0_6] : memref<8x8xf32, #tpu.memory_space<vmem>>, vector<8x8xf32>
    %cst = arith.constant dense<0.000000e+00> : vector<8x128xf32>
    %9 = tpu.matmul %8, %0, %cst {dimension_numbers = #tpu.dot_dimension_numbers<[1], [0], [0], [1], [0, 0, 1, 1], [], []>} : vector<8x8xf32>, vector<8x128xf32>, vector<8x128xf32> -> vector<8x128xf32>
    %10 = vector.broadcast %5 : vector<1x128xf32> to vector<8x128xf32>
    %11 = arith.addf %9, %10 : vector<8x128xf32>
    %cst_7 = arith.constant 0.000000e+00 : f32
    %12 = vector.broadcast %cst_7 : f32 to vector<8x128xf32>
    %13 = arith.maximumf %11, %12 : vector<8x128xf32>
    %cst_8 = arith.constant dense<0.000000e+00> : vector<8x128xf32>
    %14 = tpu.matmul %13, %1, %cst_8 {dimension_numbers = #tpu.dot_dimension_numbers<[1], [0], [0], [1], [0, 0, 1, 1], [], []>} : vector<8x128xf32>, vector<128x128xf32>, vector<8x128xf32> -> vector<8x128xf32>
    %15 = vector.broadcast %6 : vector<1x128xf32> to vector<8x128xf32>
    %16 = arith.addf %14, %15 : vector<8x128xf32>
    %cst_9 = arith.constant 0.000000e+00 : f32
    %17 = vector.broadcast %cst_9 : f32 to vector<8x128xf32>
    %18 = arith.maximumf %16, %17 : vector<8x128xf32>
    %cst_10 = arith.constant dense<0.000000e+00> : vector<8x128xf32>
    %19 = tpu.matmul %18, %2, %cst_10 {dimension_numbers = #tpu.dot_dimension_numbers<[1], [0], [0], [1], [0, 0, 1, 1], [], []>} : vector<8x128xf32>, vector<128x128xf32>, vector<8x128xf32> -> vector<8x128xf32>
    %20 = vector.broadcast %7 : vector<1x128xf32> to vector<8x128xf32>
    %21 = arith.addf %19, %20 : vector<8x128xf32>
    %22 = tpu.iota {dimensions = array<i32: 1>} : vector<1x128xi32>
    %cst_11 = arith.constant 0.000000e+00 : f32
    %23 = vector.broadcast %cst_11 : f32 to vector<8x128xf32>
    %c0_i32 = arith.constant 0 : i32
    %24 = vector.broadcast %c0_i32 : i32 to vector<1x128xi32>
    %25 = arith.cmpi sge, %22, %24 : vector<1x128xi32>
    %c3_i32 = arith.constant 3 : i32
    %26 = vector.broadcast %c3_i32 : i32 to vector<1x128xi32>
    %27 = arith.cmpi slt, %22, %26 : vector<1x128xi32>
    %28 = arith.andi %25, %27 : vector<1x128xi1>
    %cst_12 = arith.constant 0xFF800000 : f32
    %29 = vector.shape_cast %28 : vector<1x128xi1> to vector<1x128xi1>
    %30 = vector.broadcast %29 : vector<1x128xi1> to vector<8x128xi1>
    %31 = vector.broadcast %cst_12 : f32 to vector<8x128xf32>
    %32 = arith.select %30, %21, %31 : vector<8x128xi1>, vector<8x128xf32>
    %cst_13 = arith.constant dense<0xFF800000> : vector<8xf32>
    %33 = vector.multi_reduction <maximumf>, %32, %cst_13 [1] : vector<8x128xf32> to vector<8xf32>
    %34 = vector.shape_cast %33 : vector<8xf32> to vector<8x1xf32>
    %35 = vector.shape_cast %28 : vector<1x128xi1> to vector<1x128xi1>
    %36 = vector.broadcast %35 : vector<1x128xi1> to vector<8x128xi1>
    %37 = vector.shape_cast %34 : vector<8x1xf32> to vector<8x1xf32>
    %38 = vector.broadcast %37 : vector<8x1xf32> to vector<8x128xf32>
    %39 = arith.select %36, %38, %23 : vector<8x128xi1>, vector<8x128xf32>
    %c3_i32_14 = arith.constant 3 : i32
    %40 = vector.broadcast %c3_i32_14 : i32 to vector<1x128xi32>
    %41 = arith.cmpi sge, %22, %40 : vector<1x128xi32>
    %c6_i32 = arith.constant 6 : i32
    %42 = vector.broadcast %c6_i32 : i32 to vector<1x128xi32>
    %43 = arith.cmpi slt, %22, %42 : vector<1x128xi32>
    %44 = arith.andi %41, %43 : vector<1x128xi1>
    %cst_15 = arith.constant 0xFF800000 : f32
    %45 = vector.shape_cast %44 : vector<1x128xi1> to vector<1x128xi1>
    %46 = vector.broadcast %45 : vector<1x128xi1> to vector<8x128xi1>
    %47 = vector.broadcast %cst_15 : f32 to vector<8x128xf32>
    %48 = arith.select %46, %21, %47 : vector<8x128xi1>, vector<8x128xf32>
    %cst_16 = arith.constant dense<0xFF800000> : vector<8xf32>
    %49 = vector.multi_reduction <maximumf>, %48, %cst_16 [1] : vector<8x128xf32> to vector<8xf32>
    %50 = vector.shape_cast %49 : vector<8xf32> to vector<8x1xf32>
    %51 = vector.shape_cast %44 : vector<1x128xi1> to vector<1x128xi1>
    %52 = vector.broadcast %51 : vector<1x128xi1> to vector<8x128xi1>
    %53 = vector.shape_cast %50 : vector<8x1xf32> to vector<8x1xf32>
    %54 = vector.broadcast %53 : vector<8x1xf32> to vector<8x128xf32>
    %55 = arith.select %52, %54, %39 : vector<8x128xi1>, vector<8x128xf32>
    %c6_i32_17 = arith.constant 6 : i32
    %56 = vector.broadcast %c6_i32_17 : i32 to vector<1x128xi32>
    %57 = arith.cmpi sge, %22, %56 : vector<1x128xi32>
    %c9_i32 = arith.constant 9 : i32
    %58 = vector.broadcast %c9_i32 : i32 to vector<1x128xi32>
    %59 = arith.cmpi slt, %22, %58 : vector<1x128xi32>
    %60 = arith.andi %57, %59 : vector<1x128xi1>
    %cst_18 = arith.constant 0xFF800000 : f32
    %61 = vector.shape_cast %60 : vector<1x128xi1> to vector<1x128xi1>
    %62 = vector.broadcast %61 : vector<1x128xi1> to vector<8x128xi1>
    %63 = vector.broadcast %cst_18 : f32 to vector<8x128xf32>
    %64 = arith.select %62, %21, %63 : vector<8x128xi1>, vector<8x128xf32>
    %cst_19 = arith.constant dense<0xFF800000> : vector<8xf32>
    %65 = vector.multi_reduction <maximumf>, %64, %cst_19 [1] : vector<8x128xf32> to vector<8xf32>
    %66 = vector.shape_cast %65 : vector<8xf32> to vector<8x1xf32>
    %67 = vector.shape_cast %60 : vector<1x128xi1> to vector<1x128xi1>
    %68 = vector.broadcast %67 : vector<1x128xi1> to vector<8x128xi1>
    %69 = vector.shape_cast %66 : vector<8x1xf32> to vector<8x1xf32>
    %70 = vector.broadcast %69 : vector<8x1xf32> to vector<8x128xf32>
    %71 = arith.select %68, %70, %55 : vector<8x128xi1>, vector<8x128xf32>
    %c9_i32_20 = arith.constant 9 : i32
    %72 = vector.broadcast %c9_i32_20 : i32 to vector<1x128xi32>
    %73 = arith.cmpi sge, %22, %72 : vector<1x128xi32>
    %c12_i32 = arith.constant 12 : i32
    %74 = vector.broadcast %c12_i32 : i32 to vector<1x128xi32>
    %75 = arith.cmpi slt, %22, %74 : vector<1x128xi32>
    %76 = arith.andi %73, %75 : vector<1x128xi1>
    %cst_21 = arith.constant 0xFF800000 : f32
    %77 = vector.shape_cast %76 : vector<1x128xi1> to vector<1x128xi1>
    %78 = vector.broadcast %77 : vector<1x128xi1> to vector<8x128xi1>
    %79 = vector.broadcast %cst_21 : f32 to vector<8x128xf32>
    %80 = arith.select %78, %21, %79 : vector<8x128xi1>, vector<8x128xf32>
    %cst_22 = arith.constant dense<0xFF800000> : vector<8xf32>
    %81 = vector.multi_reduction <maximumf>, %80, %cst_22 [1] : vector<8x128xf32> to vector<8xf32>
    %82 = vector.shape_cast %81 : vector<8xf32> to vector<8x1xf32>
    %83 = vector.shape_cast %76 : vector<1x128xi1> to vector<1x128xi1>
    %84 = vector.broadcast %83 : vector<1x128xi1> to vector<8x128xi1>
    %85 = vector.shape_cast %82 : vector<8x1xf32> to vector<8x1xf32>
    %86 = vector.broadcast %85 : vector<8x1xf32> to vector<8x128xf32>
    %87 = arith.select %84, %86, %71 : vector<8x128xi1>, vector<8x128xf32>
    %c12_i32_23 = arith.constant 12 : i32
    %88 = vector.broadcast %c12_i32_23 : i32 to vector<1x128xi32>
    %89 = arith.cmpi sge, %22, %88 : vector<1x128xi32>
    %c15_i32 = arith.constant 15 : i32
    %90 = vector.broadcast %c15_i32 : i32 to vector<1x128xi32>
    %91 = arith.cmpi slt, %22, %90 : vector<1x128xi32>
    %92 = arith.andi %89, %91 : vector<1x128xi1>
    %cst_24 = arith.constant 0xFF800000 : f32
    %93 = vector.shape_cast %92 : vector<1x128xi1> to vector<1x128xi1>
    %94 = vector.broadcast %93 : vector<1x128xi1> to vector<8x128xi1>
    %95 = vector.broadcast %cst_24 : f32 to vector<8x128xf32>
    %96 = arith.select %94, %21, %95 : vector<8x128xi1>, vector<8x128xf32>
    %cst_25 = arith.constant dense<0xFF800000> : vector<8xf32>
    %97 = vector.multi_reduction <maximumf>, %96, %cst_25 [1] : vector<8x128xf32> to vector<8xf32>
    %98 = vector.shape_cast %97 : vector<8xf32> to vector<8x1xf32>
    %99 = vector.shape_cast %92 : vector<1x128xi1> to vector<1x128xi1>
    %100 = vector.broadcast %99 : vector<1x128xi1> to vector<8x128xi1>
    %101 = vector.shape_cast %98 : vector<8x1xf32> to vector<8x1xf32>
    %102 = vector.broadcast %101 : vector<8x1xf32> to vector<8x128xf32>
    %103 = arith.select %100, %102, %87 : vector<8x128xi1>, vector<8x128xf32>
    %104 = arith.subf %21, %103 : vector<8x128xf32>
    %105 = math.exp %104 : vector<8x128xf32>
    %cst_26 = arith.constant dense<0.000000e+00> : vector<8x128xf32>
    %106 = tpu.matmul %105, %4, %cst_26 {dimension_numbers = #tpu.dot_dimension_numbers<[1], [0], [0], [1], [0, 0, 1, 1], [], []>} : vector<8x128xf32>, vector<128x128xf32>, vector<8x128xf32> -> vector<8x128xf32>
    %107 = tpu.reciprocal %106 : vector<8x128xf32> -> vector<8x128xf32>
    %108 = arith.mulf %105, %107 : vector<8x128xf32>
    %c0_27 = arith.constant 0 : index
    %c0_28 = arith.constant 0 : index
    %109 = vector.load %arg3[%c0_27, %c0_28] : memref<8x128xf32, #tpu.memory_space<vmem>>, vector<8x128xf32>
    tpu.vector_store %arg3[%c0_27, %c0_28], %108 {strides = array<i32>} : memref<8x128xf32, #tpu.memory_space<vmem>>, vector<8x128xf32>,
    return
  }
  func.func @transform_0(%arg0: i32) -> (i32, i32) {
    %c0_i32 = arith.constant 0 : i32
    %c0_i32_0 = arith.constant 0 : i32
    return %arg0, %c0_i32 : i32, i32
  }
  func.func @transform_1(%arg0: i32) -> (i32, i32) {
    %c0_i32 = arith.constant 0 : i32
    %c0_i32_0 = arith.constant 0 : i32
    %c0_i32_1 = arith.constant 0 : i32
    return %c0_i32, %c0_i32_0 : i32, i32
  }
  func.func @transform_2(%arg0: i32) -> (i32, i32) {
    %c0_i32 = arith.constant 0 : i32
    %c0_i32_0 = arith.constant 0 : i32
    return %arg0, %c0_i32 : i32, i32
  }
}

</mosaic_0001>

<llo_original>
// kernel: _policy_forward_jit.1
$region0: #{_policy_forward_jit.1}
  #allocation0 [shape = 'u32[]', space=smem, size = 0x4, offset = 0x4, fixed_abs, tag = 'smem constant byte address 0x4 - core index']
  #allocation1 [shape = 'u32[144,128]{1,0:T(1,128)}', space=vmem, size = 0x12000, scoped, tag = 'internal scratch']
  %s0 = inlined_call_operand.vmem [shape: f32[8,8], index: 0, kind: input, shape index: {}]
  %s1 = inlined_call_operand.hbm [shape: f32[400,128], index: 1, kind: input, shape index: {}]
  %s2 = inlined_call_operand.vmem [shape: f32[8,128], index: 2, kind: output, shape index: {}]
  %s3 = sld [smem:[#allocation0]]
  $region22: #{_policy_forward_jit.1} parent=0
    _
  %s5 = ssub.s32 1, %s3
  %s6 = scalar_select 0, %s5, %s3
  $region1: #{_policy_forward_jit.1} parent=0
    #allocation2 [shape = 'u8[204800]{0}', space=vmem, size = 0x32000, scoped, tag = 'input window, operand 1, single buffered']
    #allocation3 [shape = 's32[1]{0}', space=sflag, size = 0x4, scoped, tag = 'scoped memory for _policy_forward_jit.1']
    %7 = vsyncpa [#allocation3], 0
    // Predicated region
    $region2: #{_policy_forward_jit.1} parent=1 // pred_check
      _
    $region3: #{_policy_forward_jit.1} parent=1 // pred_check_branch
      %9 = sbr.rel (0) target = $region5
    $region4: #{_policy_forward_jit.1} parent=1 // pred_region
      _
    $region5: #{_policy_forward_jit.1} parent=1 // pred_fallthru
      _
    // Predicated region
    $region6: #{_policy_forward_jit.1} parent=1 // pred_check
      _
    $region7: #{_policy_forward_jit.1} parent=1 // pred_check_branch
      %11 = sbr.rel (0) target = $region9
    $region8: #{_policy_forward_jit.1} parent=1 // pred_region
      %s13 = ssub.s32 6400, 6400
      %14 = vsyncadd [#allocation3], %s13
      %s15 = sshll.u32 [#allocation2], 4
      %s16 = int_to_ptr.vmem [resolvable:$true] %s15
      %21 = dma.hbm_to_vmem [thread:$0]  %s1, 6400, %s16, [#allocation3], 128, 128, 8
    $region9: #{_policy_forward_jit.1} parent=1 // pred_fallthru
      _
    // Predicated region
    $region10: #{_policy_forward_jit.1} parent=1 // pred_check
      _
    $region11: #{_policy_forward_jit.1} parent=1 // pred_check_branch
      %23 = sbr.rel (0) target = $region13
    $region12: #{_policy_forward_jit.1} parent=1 // pred_region
      %24 = dma.done [#allocation3], 6400
    $region13: #{_policy_forward_jit.1} parent=1 // pred_fallthru
      _
    %v25 = vld [vmem:[#allocation2] sm:$0xff]
    %v26 = vld [vmem:[#allocation2 + $0x8] sm:$0xff]
    %v27 = vld [vmem:[#allocation2 + $0x10] sm:$0xff]
    %v28 = vld [vmem:[#allocation2 + $0x18] sm:$0xff]
    %v29 = vld [vmem:[#allocation2 + $0x20] sm:$0xff]
    %v30 = vld [vmem:[#allocation2 + $0x28] sm:$0xff]
    %v31 = vld [vmem:[#allocation2 + $0x30] sm:$0xff]
    %v32 = vld [vmem:[#allocation2 + $0x38] sm:$0xff]
    %v33 = vld [vmem:[#allocation2 + $0x40] sm:$0xff]
    %v34 = vld [vmem:[#allocation2 + $0x48] sm:$0xff]
    %v35 = vld [vmem:[#allocation2 + $0x50] sm:$0xff]
    %v36 = vld [vmem:[#allocation2 + $0x58] sm:$0xff]
    %v37 = vld [vmem:[#allocation2 + $0x60] sm:$0xff]
    %v38 = vld [vmem:[#allocation2 + $0x68] sm:$0xff]
    %v39 = vld [vmem:[#allocation2 + $0x70] sm:$0xff]
    %v40 = vld [vmem:[#allocation2 + $0x78] sm:$0xff]
    %v41 = vld [vmem:[#allocation2 + $0x80] sm:$0xff]
    %v42 = vld [vmem:[#allocation2 + $0x88] sm:$0xff]
    %v43 = vld [vmem:[#allocation2 + $0x90] sm:$0xff]
    %v44 = vld [vmem:[#allocation2 + $0x98] sm:$0xff]
    %v45 = vld [vmem:[#allocation2 + $0xa0] sm:$0xff]
    %v46 = vld [vmem:[#allocation2 + $0xa8] sm:$0xff]
    %v47 = vld [vmem:[#allocation2 + $0xb0] sm:$0xff]
    %v48 = vld [vmem:[#allocation2 + $0xb8] sm:$0xff]
    %v49 = vld [vmem:[#allocation2 + $0xc0] sm:$0xff]
    %v50 = vld [vmem:[#allocation2 + $0xc8] sm:$0xff]
    %v51 = vld [vmem:[#allocation2 + $0xd0] sm:$0xff]
    %v52 = vld [vmem:[#allocation2 + $0xd8] sm:$0xff]
    %v53 = vld [vmem:[#allocation2 + $0xe0] sm:$0xff]
    %v54 = vld [vmem:[#allocation2 + $0xe8] sm:$0xff]
    %v55 = vld [vmem:[#allocation2 + $0xf0] sm:$0xff]
    %v56 = vld [vmem:[#allocation2 + $0xf8] sm:$0xff]
    %v57 = vld [vmem:[#allocation2 + $0x100] sm:$0xff]
    %v58 = vld [vmem:[#allocation2 + $0x108] sm:$0xff]
    %v59 = vld [vmem:[#allocation2 + $0x110] sm:$0xff]
    %v60 = vld [vmem:[#allocation2 + $0x118] sm:$0xff]
    %v61 = vld [vmem:[#allocation2 + $0x120] sm:$0xff]
    %v62 = vld [vmem:[#allocation2 + $0x128] sm:$0xff]
    %v63 = vld [vmem:[#allocation2 + $0x130] sm:$0xff]
    %v64 = vld [vmem:[#allocation2 + $0x138] sm:$0xff]
    %v65 = vld [vmem:[#allocation2 + $0x140] sm:$0xff]
    %v66 = vld [vmem:[#allocation2 + $0x148] sm:$0xff]
    %v67 = vld [vmem:[#allocation2 + $0x150] sm:$0xff]
    %v68 = vld [vmem:[#allocation2 + $0x158] sm:$0xff]
    %v69 = vld [vmem:[#allocation2 + $0x160] sm:$0xff]
    %v70 = vld [vmem:[#allocation2 + $0x168] sm:$0xff]
    %v71 = vld [vmem:[#allocation2 + $0x170] sm:$0xff]
    %v72 = vld [vmem:[#allocation2 + $0x178] sm:$0xff]
    %v73 = vld [vmem:[#allocation2 + $0x180] sm:$0xff]
    %v74 = vld [vmem:[#allocation2 + $0x188] sm:$0xff]
    %v75 = vld [vmem:[%s0] sm:$0xff]
    %v76 = vlaneseq
    %v77 = vshrl.u32 %v76, 7
    %v78 = vsub.s32 0, %v77
    %v79 = vrot.slane %v58, %v78
    %vm80 = vcmask 64512
    %v82 = vsel %vm80, %v75, 0
    %84 = vmatprep.subr.mxu0 0.0
    %85 = vmatpush1.msra.mxu0 %v25
    %86 = vmatprep.subr.mxu0 0.0
    %87 = vmatpush1.msra.mxu0 0.0
    %88 = vmatprep.subr.mxu0 0.0
    %89 = vmatpush1.msra.mxu0 0.0
    %90 = vmatprep.subr.mxu0 0.0
    %91 = vmatpush1.msra.mxu0 0.0
    %92 = vmatprep.subr.mxu0 0.0
    %93 = vmatpush1.msra.mxu0 0.0
    %94 = vmatprep.subr.mxu0 0.0
    %95 = vmatpush1.msra.mxu0 0.0
    %96 = vmatprep.subr.mxu0 0.0
    %97 = vmatpush1.msra.mxu0 0.0
    %98 = vmatprep.subr.mxu0 0.0
    %99 = vmatpush1.msra.mxu0 0.0
    %100 = vmatprep.subr.mxu0 0.0
    %101 = vmatpush1.msra.mxu0 0.0
    %102 = vmatprep.subr.mxu0 0.0
    %103 = vmatpush1.msra.mxu0 0.0
    %104 = vmatprep.subr.mxu0 0.0
    %105 = vmatpush1.msra.mxu0 0.0
    %106 = vmatprep.subr.mxu0 0.0
    %107 = vmatpush1.msra.mxu0 0.0
    %108 = vmatprep.subr.mxu0 0.0
    %109 = vmatpush1.msra.mxu0 0.0
    %110 = vmatprep.subr.mxu0 0.0
    %111 = vmatpush1.msra.mxu0 0.0
    %112 = vmatprep.subr.mxu0 0.0
    %113 = vmatpush1.msra.mxu0 0.0
    %114 = vmatprep.subr.mxu0 0.0
    %115 = vmatpush1.msra.mxu0 0.0
    %116 = vmatprep.subr.mxu0 0.0
    %117 = vmatpush1.msra.mxu0 0.0
    %118 = vmatprep.subr.mxu0 0.0
    %119 = vmatpush1.msra.mxu0 0.0
    %120 = vmatprep.subr.mxu0 0.0
    %121 = vmatpush1.msra.mxu0 0.0
    %122 = vmatprep.subr.mxu0 0.0
    %123 = vmatpush1.msra.mxu0 0.0
    %124 = vmatprep.subr.mxu0 0.0
    %125 = vmatpush1.msra.mxu0 0.0
    %126 = vmatprep.subr.mxu0 0.0
    %127 = vmatpush1.msra.mxu0 0.0
    %128 = vmatprep.subr.mxu0 0.0
    %129 = vmatpush1.msra.mxu0 0.0
    %130 = vmatprep.subr.mxu0 0.0
    %131 = vmatpush1.msra.mxu0 0.0
    %132 = vmatprep.subr.mxu0 0.0
    %133 = vmatpush1.msra.mxu0 0.0
    %134 = vmatprep.subr.mxu0 0.0
    %135 = vmatpush1.msra.mxu0 0.0
    %136 = vmatprep.subr.mxu0 0.0
    %137 = vmatpush1.msra.mxu0 0.0
    %138 = vmatprep.subr.mxu0 0.0
    %139 = vmatpush1.msra.mxu0 0.0
    %140 = vmatprep.subr.mxu0 0.0
    %141 = vmatpush1.msra.mxu0 0.0
    %142 = vmatprep.subr.mxu0 0.0
    %143 = vmatpush1.msra.mxu0 0.0
    %144 = vmatprep.subr.mxu0 0.0
    %145 = vmatpush1.msra.mxu0 0.0
    %146 = vmatprep.subr.mxu0 0.0
    %147 = vmatpush1.msra.mxu0 0.0
    %148 = vmatprep.mubr.f32.mxu0 0.0
    %149 = vmatmul.mubr.f32.gmra.mrb[0].mxu0 %v82
    %v150 = vpop.f32.mrb[0].mxu0
    %v151 = vadd.f32 %v79, %v150
    %v152 = vpop.f32.mrb[0].mxu0
    %153 = vdwg.mxu0
    %v154 = vmax.f32 %v151, 0.0
    %v155 = vlaneseq
    %v156 = vshrl.u32 %v155, 7
    %v157 = vsub.s32 1, %v156
    %v158 = vrot.slane %v58, %v157
    %159 = vmatprep.subr.mxu0 0.0
    %160 = vmatpush1.msra.mxu0 %v26
    %161 = vmatprep.subr.mxu0 0.0
    %162 = vmatpush1.msra.mxu0 %v27
    %163 = vmatprep.subr.mxu0 0.0
    %164 = vmatpush1.msra.mxu0 %v28
    %165 = vmatprep.subr.mxu0 0.0
    %166 = vmatpush1.msra.mxu0 %v29
    %167 = vmatprep.subr.mxu0 0.0
    %168 = vmatpush1.msra.mxu0 %v30
    %169 = vmatprep.subr.mxu0 0.0
    %170 = vmatpush1.msra.mxu0 %v31
    %171 = vmatprep.subr.mxu0 0.0
    %172 = vmatpush1.msra.mxu0 %v32
    %173 = vmatprep.subr.mxu0 0.0
    %174 = vmatpush1.msra.mxu0 %v33
    %175 = vmatprep.subr.mxu0 0.0
    %176 = vmatpush1.msra.mxu0 %v34
    %177 = vmatprep.subr.mxu0 0.0
    %178 = vmatpush1.msra.mxu0 %v35
    %179 = vmatprep.subr.mxu0 0.0
    %180 = vmatpush1.msra.mxu0 %v36
    %181 = vmatprep.subr.mxu0 0.0
    %182 = vmatpush1.msra.mxu0 %v37
    %183 = vmatprep.subr.mxu0 0.0
    %184 = vmatpush1.msra.mxu0 %v38
    %185 = vmatprep.subr.mxu0 0.0
    %186 = vmatpush1.msra.mxu0 %v39
    %187 = vmatprep.subr.mxu0 0.0
    %188 = vmatpush1.msra.mxu0 %v40
    %189 = vmatprep.subr.mxu0 0.0
    %190 = vmatpush1.msra.mxu0 %v41
    %191 = vmatprep.subr.mxu0 0.0
    %192 = vmatpush1.msra.mxu0 0.0
    %193 = vmatprep.subr.mxu0 0.0
    %194 = vmatpush1.msra.mxu0 0.0
    %195 = vmatprep.subr.mxu0 0.0
    %196 = vmatpush1.msra.mxu0 0.0
    %197 = vmatprep.subr.mxu0 0.0
    %198 = vmatpush1.msra.mxu0 0.0
    %199 = vmatprep.subr.mxu0 0.0
    %200 = vmatpush1.msra.mxu0 0.0
    %201 = vmatprep.subr.mxu0 0.0
    %202 = vmatpush1.msra.mxu0 0.0
    %203 = vmatprep.subr.mxu0 0.0
    %204 = vmatpush1.msra.mxu0 0.0
    %205 = vmatprep.subr.mxu0 0.0
    %206 = vmatpush1.msra.mxu0 0.0
    %207 = vmatprep.subr.mxu0 0.0
    %208 = vmatpush1.msra.mxu0 0.0
    %209 = vmatprep.subr.mxu0 0.0
    %210 = vmatpush1.msra.mxu0 0.0
    %211 = vmatprep.subr.mxu0 0.0
    %212 = vmatpush1.msra.mxu0 0.0
    %213 = vmatprep.subr.mxu0 0.0
    %214 = vmatpush1.msra.mxu0 0.0
    %215 = vmatprep.subr.mxu0 0.0
    %216 = vmatpush1.msra.mxu0 0.0
    %217 = vmatprep.subr.mxu0 0.0
    %218 = vmatpush1.msra.mxu0 0.0
    %219 = vmatprep.subr.mxu0 0.0
    %220 = vmatpush1.msra.mxu0 0.0
    %221 = vmatprep.subr.mxu0 0.0
    %222 = vmatpush1.msra.mxu0 0.0
    %223 = vmatprep.mubr.f32.mxu0 0.0
    %224 = vmatmul.mubr.f32.gmra.mrb[0].mxu0 %v154
    %v225 = vpop.f32.mrb[0].mxu0
    %v226 = vadd.f32 %v158, %v225
    %v227 = vpop.f32.mrb[0].mxu0
    %228 = vdwg.mxu0
    %v229 = vmax.f32 %v226, 0.0
    %v230 = vlaneseq
    %v231 = vshrl.u32 %v230, 7
    %v232 = vsub.s32 2, %v231
    %v233 = vrot.slane %v58, %v232
    %234 = vmatprep.subr.mxu0 0.0
    %235 = vmatpush1.msra.mxu0 %v42
    %236 = vmatprep.subr.mxu0 0.0
    %237 = vmatpush1.msra.mxu0 %v43
    %238 = vmatprep.subr.mxu0 0.0
    %239 = vmatpush1.msra.mxu0 %v44
    %240 = vmatprep.subr.mxu0 0.0
    %241 = vmatpush1.msra.mxu0 %v45
    %242 = vmatprep.subr.mxu0 0.0
    %243 = vmatpush1.msra.mxu0 %v46
    %244 = vmatprep.subr.mxu0 0.0
    %245 = vmatpush1.msra.mxu0 %v47
    %246 = vmatprep.subr.mxu0 0.0
    %247 = vmatpush1.msra.mxu0 %v48
    %248 = vmatprep.subr.mxu0 0.0
    %249 = vmatpush1.msra.mxu0 %v49
    %250 = vmatprep.subr.mxu0 0.0
    %251 = vmatpush1.msra.mxu0 %v50
    %252 = vmatprep.subr.mxu0 0.0
    %253 = vmatpush1.msra.mxu0 %v51
    %254 = vmatprep.subr.mxu0 0.0
    %255 = vmatpush1.msra.mxu0 %v52
    %256 = vmatprep.subr.mxu0 0.0
    %257 = vmatpush1.msra.mxu0 %v53
    %258 = vmatprep.subr.mxu0 0.0
    %259 = vmatpush1.msra.mxu0 %v54
    %260 = vmatprep.subr.mxu0 0.0
    %261 = vmatpush1.msra.mxu0 %v55
    %262 = vmatprep.subr.mxu0 0.0
    %263 = vmatpush1.msra.mxu0 %v56
    %264 = vmatprep.subr.mxu0 0.0
    %265 = vmatpush1.msra.mxu0 %v57
    %266 = vmatprep.subr.mxu0 0.0
    %267 = vmatpush1.msra.mxu0 0.0
    %268 = vmatprep.subr.mxu0 0.0
    %269 = vmatpush1.msra.mxu0 0.0
    %270 = vmatprep.subr.mxu0 0.0
    %271 = vmatpush1.msra.mxu0 0.0
    %272 = vmatprep.subr.mxu0 0.0
    %273 = vmatpush1.msra.mxu0 0.0
    %274 = vmatprep.subr.mxu0 0.0
    %275 = vmatpush1.msra.mxu0 0.0
    %276 = vmatprep.subr.mxu0 0.0
    %277 = vmatpush1.msra.mxu0 0.0
    %278 = vmatprep.subr.mxu0 0.0
    %279 = vmatpush1.msra.mxu0 0.0
    %280 = vmatprep.subr.mxu0 0.0
    %281 = vmatpush1.msra.mxu0 0.0
    %282 = vmatprep.subr.mxu0 0.0
    %283 = vmatpush1.msra.mxu0 0.0
    %284 = vmatprep.subr.mxu0 0.0
    %285 = vmatpush1.msra.mxu0 0.0
    %286 = vmatprep.subr.mxu0 0.0
    %287 = vmatpush1.msra.mxu0 0.0
    %288 = vmatprep.subr.mxu0 0.0
    %289 = vmatpush1.msra.mxu0 0.0
    %290 = vmatprep.subr.mxu0 0.0
    %291 = vmatpush1.msra.mxu0 0.0
    %292 = vmatprep.subr.mxu0 0.0
    %293 = vmatpush1.msra.mxu0 0.0
    %294 = vmatprep.subr.mxu0 0.0
    %295 = vmatpush1.msra.mxu0 0.0
    %296 = vmatprep.subr.mxu0 0.0
    %297 = vmatpush1.msra.mxu0 0.0
    %298 = vmatprep.mubr.f32.mxu0 0.0
    %299 = vmatmul.mubr.f32.gmra.mrb[0].mxu0 %v229
    %v300 = vpop.f32.mrb[0].mxu0
    %v301 = vadd.f32 %v233, %v300
    %v302 = vpop.f32.mrb[0].mxu0
    %303 = vdwg.mxu0
    %v304 = vlaneseq
    %v305 = vand.u32 %v304, 127
    %vm306 = vcmp.ge.s32.totalorder %v305, 0
    %vm307 = vcmp.lt.s32.totalorder %v305, 3
    %vm308 = vmand %vm306, %vm307
    %v309 = vsel %vm308, 1, 0
    %vm310 = vcmp.eq.s32.totalorder %v309, 1
    %v311 = vsel %vm310, %v301, -inf
    %312 = vmax.xlane.f32.xlu0 %v311
    %v313 = vpop.xlane.xlu0 %312
    %v314 = vsel %vm310, %v313, 0.0
    %vm315 = vcmp.ge.s32.totalorder %v305, 3
    %vm316 = vcmp.lt.s32.totalorder %v305, 6
    %vm317 = vmand %vm315, %vm316
    %v318 = vsel %vm317, 1, 0
    %vm319 = vcmp.eq.s32.totalorder %v318, 1
    %v320 = vsel %vm319, %v301, -inf
    %321 = vmax.xlane.f32.xlu0 %v320
    %v322 = vpop.xlane.xlu0 %321
    %v323 = vsel %vm319, %v322, %v314
    %vm324 = vcmp.ge.s32.totalorder %v305, 6
    %vm325 = vcmp.lt.s32.totalorder %v305, 9
    %vm326 = vmand %vm324, %vm325
    %v327 = vsel %vm326, 1, 0
    %vm328 = vcmp.eq.s32.totalorder %v327, 1
    %v329 = vsel %vm328, %v301, -inf
    %330 = vmax.xlane.f32.xlu0 %v329
    %v331 = vpop.xlane.xlu0 %330
    %v332 = vsel %vm328, %v331, %v323
    %vm333 = vcmp.ge.s32.totalorder %v305, 9
    %vm334 = vcmp.lt.s32.totalorder %v305, 12
    %vm335 = vmand %vm333, %vm334
    %v336 = vsel %vm335, 1, 0
    %vm337 = vcmp.eq.s32.totalorder %v336, 1
    %v338 = vsel %vm337, %v301, -inf
    %339 = vmax.xlane.f32.xlu0 %v338
    %v340 = vpop.xlane.xlu0 %339
    %v341 = vsel %vm337, %v340, %v332
    %vm342 = vcmp.ge.s32.totalorder %v305, 12
    %vm343 = vcmp.lt.s32.totalorder %v305, 15
    %vm344 = vmand %vm342, %vm343
    %v345 = vsel %vm344, 1, 0
    %vm346 = vcmp.eq.s32.totalorder %v345, 1
    %v347 = vsel %vm346, %v301, -inf
    %348 = vmax.xlane.f32.xlu0 %v347
    %v349 = vpop.xlane.xlu0 %348
    %v350 = vsel %vm346, %v349, %v341
    %v351 = vsub.f32 %v301, %v350
    %v352 = vmul.f32 %v351, 1.442695
    %v353 = vpow.pop %v352
    %354 = vmatprep.subr.mxu0 0.0
    %355 = vmatpush1.msra.mxu0 %v59
    %356 = vmatprep.subr.mxu0 0.0
    %357 = vmatpush1.msra.mxu0 %v60
    %358 = vmatprep.subr.mxu0 0.0
    %359 = vmatpush1.msra.mxu0 %v61
    %360 = vmatprep.subr.mxu0 0.0
    %361 = vmatpush1.msra.mxu0 %v62
    %362 = vmatprep.subr.mxu0 0.0
    %363 = vmatpush1.msra.mxu0 %v63
    %364 = vmatprep.subr.mxu0 0.0
    %365 = vmatpush1.msra.mxu0 %v64
    %366 = vmatprep.subr.mxu0 0.0
    %367 = vmatpush1.msra.mxu0 %v65
    %368 = vmatprep.subr.mxu0 0.0
    %369 = vmatpush1.msra.mxu0 %v66
    %370 = vmatprep.subr.mxu0 0.0
    %371 = vmatpush1.msra.mxu0 %v67
    %372 = vmatprep.subr.mxu0 0.0
    %373 = vmatpush1.msra.mxu0 %v68
    %374 = vmatprep.subr.mxu0 0.0
    %375 = vmatpush1.msra.mxu0 %v69
    %376 = vmatprep.subr.mxu0 0.0
    %377 = vmatpush1.msra.mxu0 %v70
    %378 = vmatprep.subr.mxu0 0.0
    %379 = vmatpush1.msra.mxu0 %v71
    %380 = vmatprep.subr.mxu0 0.0
    %381 = vmatpush1.msra.mxu0 %v72
    %382 = vmatprep.subr.mxu0 0.0
    %383 = vmatpush1.msra.mxu0 %v73
    %384 = vmatprep.subr.mxu0 0.0
    %385 = vmatpush1.msra.mxu0 %v74
    %386 = vmatprep.subr.mxu0 0.0
    %387 = vmatpush1.msra.mxu0 0.0
    %388 = vmatprep.subr.mxu0 0.0
    %389 = vmatpush1.msra.mxu0 0.0
    %390 = vmatprep.subr.mxu0 0.0
    %391 = vmatpush1.msra.mxu0 0.0
    %392 = vmatprep.subr.mxu0 0.0
    %393 = vmatpush1.msra.mxu0 0.0
    %394 = vmatprep.subr.mxu0 0.0
    %395 = vmatpush1.msra.mxu0 0.0
    %396 = vmatprep.subr.mxu0 0.0
    %397 = vmatpush1.msra.mxu0 0.0
    %398 = vmatprep.subr.mxu0 0.0
    %399 = vmatpush1.msra.mxu0 0.0
    %400 = vmatprep.subr.mxu0 0.0
    %401 = vmatpush1.msra.mxu0 0.0
    %402 = vmatprep.subr.mxu0 0.0
    %403 = vmatpush1.msra.mxu0 0.0
    %404 = vmatprep.subr.mxu0 0.0
    %405 = vmatpush1.msra.mxu0 0.0
    %406 = vmatprep.subr.mxu0 0.0
    %407 = vmatpush1.msra.mxu0 0.0
    %408 = vmatprep.subr.mxu0 0.0
    %409 = vmatpush1.msra.mxu0 0.0
    %410 = vmatprep.subr.mxu0 0.0
    %411 = vmatpush1.msra.mxu0 0.0
    %412 = vmatprep.subr.mxu0 0.0
    %413 = vmatpush1.msra.mxu0 0.0
    %414 = vmatprep.subr.mxu0 0.0
    %415 = vmatpush1.msra.mxu0 0.0
    %416 = vmatprep.subr.mxu0 0.0
    %417 = vmatpush1.msra.mxu0 0.0
    %418 = vmatprep.mubr.f32.mxu0 0.0
    %419 = vmatmul.mubr.f32.gmra.mrb[0].mxu0 %v353
    %v420 = vpop.f32.mrb[0].mxu0
    %v421 = vadd.f32 0.0, %v420
    %v422 = vpop.f32.mrb[0].mxu0
    %423 = vdwg.mxu0
    %v424 = vrcp.pop %v421
    %v425 = vmul.f32 %v353, %v424
    %426 = vst [vmem:[%s2] sm:$0xff] %v425
    // Predicated region
    $region14: #{_policy_forward_jit.1} parent=1 // pred_check
      _
    $region15: #{_policy_forward_jit.1} parent=1 // pred_check_branch
      %428 = sbr.rel (0) target = $region17
    $region16: #{_policy_forward_jit.1} parent=1 // pred_region
      _
    $region17: #{_policy_forward_jit.1} parent=1 // pred_fallthru
      _
    // Predicated region
    $region18: #{_policy_forward_jit.1} parent=1 // pred_check
      _
    $region19: #{_policy_forward_jit.1} parent=1 // pred_check_branch
      %430 = sbr.rel (0) target = $region21
    $region20: #{_policy_forward_jit.1} parent=1 // pred_region
      _
    $region21: #{_policy_forward_jit.1} parent=1 // pred_fallthru
      _
    %431 = vsyncpa [#allocation3], 1

</llo_original>
